<compile_context>
chip_gen: v7x
topology: tpu7x:2x2x1
jax: 0.10.0
libtpu: 0.0.40
codegen_flags: <defaults>
</compile_context>

<pallas_src>
import numpy as np
import jax
import jax.numpy as jnp
from jax.experimental import pallas as pl
from jax.experimental.pallas import tpu as pltpu

_LN_EPS = 1e-5   # torch.nn.LayerNorm default
LANE = 128       # TPU lane width
SUB = 8          # TPU sublane width


def _ceil_to(n, m):
    return ((n + m - 1) // m) * m


def _pad2(x, rows, cols):
    return jnp.pad(x, ((0, rows - x.shape[0]), (0, cols - x.shape[1])))


# ---------------------------------------------------------------------------
# Parameter construction (deterministic, mimics mlp() structure of the module)
# ---------------------------------------------------------------------------
def _init_mlp_params(key, input_size, layer_sizes, output_size, use_value_out):
    gain = float(np.sqrt(2.0))  # relu gain, as in the torch module
    ortho = jax.nn.initializers.orthogonal(scale=gain)
    sizes = [input_size] + list(layer_sizes) + [output_size]
    params = []
    n_layers = len(sizes) - 1
    keys = jax.random.split(key, n_layers)
    for i in range(n_layers):
        fan_in, fan_out = sizes[i], sizes[i + 1]
        layer = {
            "w": ortho(keys[i], (fan_in, fan_out), jnp.float32),
            "b": jnp.zeros((1, fan_out), jnp.float32),
        }
        # use_value_out strips ONLY the trailing activation + LayerNorm
        is_plain_last = use_value_out and (i == n_layers - 1)
        if not is_plain_last:
            layer["gamma"] = jnp.ones((1, fan_out), jnp.float32)
            layer["beta"] = jnp.zeros((1, fan_out), jnp.float32)
        layer["plain"] = is_plain_last
        params.append(layer)
    return params


def init_dynamics_params(key, concat_hidden_state_size, action_space_size,
                         fc_dynamic_layers, fc_reward_layers, full_support_size):
    concat_size = concat_hidden_state_size + action_space_size
    kd, kr = jax.random.split(key)
    return {
        "dynamic": _init_mlp_params(
            kd, concat_size, fc_dynamic_layers, concat_hidden_state_size,
            use_value_out=False),
        "reward": _init_mlp_params(
            kr, concat_size, fc_reward_layers, full_support_size,
            use_value_out=True),
    }


# ---------------------------------------------------------------------------
# Padded / packed parameter preparation for the fused kernel
# ---------------------------------------------------------------------------
def _prepare_mlp(layers, H, A):
    """Returns (weight_arrays, packed_slabs, meta).

    First layer's weight is pre-split into the state part [:H] and the action
    part [H:] (no in-kernel concat needed).  Per layer, bias/gamma/beta are
    packed into an (8, out_pad) slab: row 0 = bias, row 1 = gamma, row 2 = beta,
    the rest zero.  Slabs are later concatenated across layers/MLPs."""
    HP, AP = _ceil_to(H, LANE), _ceil_to(A, LANE)
    weights, packed_slabs, meta = [], [], []
    for i, layer in enumerate(layers):
        fan_in, fan_out = layer["w"].shape
        FP = _ceil_to(fan_out, LANE)
        if i == 0:
            weights.append(_pad2(layer["w"][:H, :], HP, FP))   # state part
            weights.append(_pad2(layer["w"][H:, :], AP, FP))   # action part
        else:
            weights.append(_pad2(layer["w"], _ceil_to(fan_in, LANE), FP))
        slab = jnp.zeros((SUB, FP), jnp.float32)
        slab = slab.at[0, :fan_out].set(layer["b"].reshape(-1))
        if not layer["plain"]:
            slab = slab.at[1, :fan_out].set(layer["gamma"].reshape(-1))
            slab = slab.at[2, :fan_out].set(layer["beta"].reshape(-1))
        packed_slabs.append(slab)
        meta.append({"first": i == 0, "plain": layer["plain"],
                     "true_out": fan_out, "fp": FP})
    return weights, packed_slabs, meta


# ---------------------------------------------------------------------------
# Fused kernel (built once per network topology)
# ---------------------------------------------------------------------------
def _build_fused_kernel(dyn_meta, rew_meta):
    n_dyn_w = sum(2 if m["first"] else 1 for m in dyn_meta)
    n_rew_w = sum(2 if m["first"] else 1 for m in rew_meta)
    n_w = n_dyn_w + n_rew_w

    def kernel(*refs):
        # refs = (state_in, action_in, *weight_refs, packed_ref, state_out, reward_out)
        state_in, action_in = refs[0], refs[1]
        w_refs = list(refs[2:2 + n_w])
        packed = refs[2 + n_w]
        state_out, reward_out = refs[-2], refs[-1]
        idx = [0]

        def take():
            r = w_refs[idx[0]]
            idx[0] += 1
            return r

        def run_layer(m, x, x2=None):
            off, fp = m["off"], m["fp"]          # static python ints
            if m["first"]:
                w_s, w_a = take(), take()
                y = jnp.dot(x, w_s[...], preferred_element_type=jnp.float32)
                y = y + jnp.dot(x2, w_a[...], preferred_element_type=jnp.float32)
            else:
                w = take()
                y = jnp.dot(x, w[...], preferred_element_type=jnp.float32)
            y = y + packed[0:1, off:off + fp]    # bias (zero in padded lanes)
            if m["plain"]:
                return y                         # padded lanes stay 0
            y = jnp.maximum(y, 0.0)              # padded lanes stay 0
            inv_d = 1.0 / float(m["true_out"])   # normalize by TRUE width
            mean = jnp.sum(y, axis=-1, keepdims=True) * inv_d
            msq = jnp.sum(y * y, axis=-1, keepdims=True) * inv_d
            var = jnp.maximum(msq - mean * mean, 0.0)
            yn = (y - mean) * jax.lax.rsqrt(var + _LN_EPS)
            # gamma/beta are zero in padded lanes -> output padded lanes = 0
            return yn * packed[1:2, off:off + fp] + packed[2:3, off:off + fp]

        pre_state = state_in[...]
        action = action_in[...]

        # ---- fc_dynamic trunk (Linear -> ReLU -> LayerNorm per layer) ----
        h = None
        for m in dyn_meta:
            h = run_layer(m, pre_state, x2=action) if m["first"] else run_layer(m, h)
        state = h + pre_state                    # residual (padded lanes 0+0)
        state_out[...] = state

        # ---- fc_reward head (last layer plain linear) ----
        r = None
        for m in rew_meta:
            r = run_layer(m, state, x2=action) if m["first"] else run_layer(m, r)
        reward_out[...] = r

    return kernel


# ---------------------------------------------------------------------------
# Forward builder: one pallas_call for the whole DynamicsNetwork.forward
# ---------------------------------------------------------------------------
def make_dynamics_forward(params, concat_hidden_state_size, action_space_size,
                          full_support_size, max_tile_b=256):
    H, A, S = concat_hidden_state_size, action_space_size, full_support_size
    HP, AP, SP = _ceil_to(H, LANE), _ceil_to(A, LANE), _ceil_to(S, LANE)

    dyn_w, dyn_slabs, dyn_meta = _prepare_mlp(params["dynamic"], H, A)
    rew_w, rew_slabs, rew_meta = _prepare_mlp(params["reward"], H, A)

    # one combined (8, total) slab for all bias/gamma/beta of both MLPs
    col = 0
    for m in dyn_meta + rew_meta:
        m["off"] = col
        col += m["fp"]
    packed_all = jnp.concatenate(dyn_slabs + rew_slabs, axis=1)

    param_arrays = dyn_w + rew_w + [packed_all]
    kernel = _build_fused_kernel(dyn_meta, rew_meta)

    # full-array blocks, constant index_map -> stay resident across grid steps
    param_specs = [pl.BlockSpec(a.shape, lambda i: (0, 0)) for a in param_arrays]

    @jax.jit
    def forward(concat_hidden_state, action):
        B = concat_hidden_state.shape[0]
        tile_b = min(_ceil_to(B, SUB), max_tile_b)   # adaptive batch tile
        BP = _ceil_to(B, tile_b)
        state_p = jnp.pad(concat_hidden_state.astype(jnp.float32),
                          ((0, BP - B), (0, HP - H)))
        action_p = jnp.pad(action.astype(jnp.float32),
                           ((0, BP - B), (0, AP - A)))

        out_state, out_reward = pl.pallas_call(
            kernel,
            out_shape=(jax.ShapeDtypeStruct((BP, HP), jnp.float32),
                       jax.ShapeDtypeStruct((BP, SP), jnp.float32)),
            grid_spec=pltpu.PrefetchScalarGridSpec(
                num_scalar_prefetch=0,
                grid=(BP // tile_b,),
                in_specs=[pl.BlockSpec((tile_b, HP), lambda i: (i, 0)),
                          pl.BlockSpec((tile_b, AP), lambda i: (i, 0))]
                         + param_specs,
                out_specs=[pl.BlockSpec((tile_b, HP), lambda i: (i, 0)),
                           pl.BlockSpec((tile_b, SP), lambda i: (i, 0))],
            ),
            compiler_params=pltpu.CompilerParams(
                dimension_semantics=("parallel",)),
        )(state_p, action_p, *param_arrays)

        return out_state[:B, :H], out_reward[:B, :S]

    return forward


# ---------------------------------------------------------------------------
# Pure-JAX reference (two-pass LayerNorm, high-precision matmul)
# ---------------------------------------------------------------------------
def _ref_forward(params, concat_hidden_state, action):
    hp = jax.lax.Precision.HIGHEST

    def block(x, layer):
        y = jnp.dot(x, layer["w"], precision=hp) + layer["b"]
        y = jnp.maximum(y, 0.0)
        mean = jnp.mean(y, axis=-1, keepdims=True)
        var = jnp.mean((y - mean) ** 2, axis=-1, keepdims=True)
        yn = (y - mean) / jnp.sqrt(var + _LN_EPS)
        return yn * layer["gamma"] + layer["beta"]

    x = jnp.concatenate([concat_hidden_state, action], axis=1)
    h = x
    for layer in params["dynamic"]:
        h = block(h, layer)
    state = h + concat_hidden_state
    r = jnp.concatenate([state, action], axis=1)
    for layer in params["reward"]:
        if layer["plain"]:
            r = jnp.dot(r, layer["w"], precision=hp) + layer["b"]
        else:
            r = block(r, layer)
    return state, r


# ---------------------------------------------------------------------------
if __name__ == "__main__":
    B = 8                       # batch
    H = 32                      # concat_hidden_state_size
    A = 8                       # action_space_size (action space * num_agents)
    fc_dynamic_layers = [32]
    fc_reward_layers = [32]
    full_support_size = 21

    key = jax.random.PRNGKey(0)
    k_x, k_a, k_p = jax.random.split(key, 3)
    concat_hidden_state = jax.random.normal(k_x, (B, H), jnp.float32)
    action = jax.random.normal(k_a, (B, A), jnp.float32)

    params = init_dynamics_params(k_p, H, A, fc_dynamic_layers,
                                  fc_reward_layers, full_support_size)

    fwd = make_dynamics_forward(params, H, A, full_support_size)
    state, reward = fwd(concat_hidden_state, action)
    jax.block_until_ready((state, reward))

    # correctness check against the pure-JAX reference
    state_ref, reward_ref = _ref_forward(params, concat_hidden_state, action)
    assert state.shape == (B, H) and reward.shape == (B, full_support_size)
    np.testing.assert_allclose(np.asarray(state), np.asarray(state_ref),
                               rtol=1e-3, atol=1e-3)
    np.testing.assert_allclose(np.asarray(reward), np.asarray(reward_ref),
                               rtol=1e-3, atol=1e-3)

    print("KERNEL_OK")
</pallas_src>

<mosaic_0001>
module attributes {stable_mosaic.version = 11 : i64} {
  func.func @kernel(%arg0: i32, %arg1: memref<8x128xf32, #tpu.memory_space<vmem>>, %arg2: memref<8x128xf32, #tpu.memory_space<vmem>>, %arg3: memref<128x128xf32, #tpu.memory_space<vmem>>, %arg4: memref<128x128xf32, #tpu.memory_space<vmem>>, %arg5: memref<128x128xf32, #tpu.memory_space<vmem>>, %arg6: memref<128x128xf32, #tpu.memory_space<vmem>>, %arg7: memref<128x128xf32, #tpu.memory_space<vmem>>, %arg8: memref<128x128xf32, #tpu.memory_space<vmem>>, %arg9: memref<8x512xf32, #tpu.memory_space<vmem>>, %arg10: memref<8x128xf32, #tpu.memory_space<vmem>>, %arg11: memref<8x128xf32, #tpu.memory_space<vmem>>) attributes {dimension_semantics = [#tpu.dimension_semantics<parallel>], iteration_bounds = array<i64: 1>, scalar_prefetch = 0 : i64, scratch_operands = 0 : i64, tpu.core_type = #tpu.core_type<tc>, window_params = [{transform_indices = @transform_0, window_bounds = array<i64: 8, 128>}, {transform_indices = @transform_1, window_bounds = array<i64: 8, 128>}, {pipeline_mode = #tpu.pipeline_mode<synchronous>, transform_indices = @transform_2, window_bounds = array<i64: 128, 128>}, {pipeline_mode = #tpu.pipeline_mode<synchronous>, transform_indices = @transform_3, window_bounds = array<i64: 128, 128>}, {pipeline_mode = #tpu.pipeline_mode<synchronous>, transform_indices = @transform_4, window_bounds = array<i64: 128, 128>}, {pipeline_mode = #tpu.pipeline_mode<synchronous>, transform_indices = @transform_5, window_bounds = array<i64: 128, 128>}, {pipeline_mode = #tpu.pipeline_mode<synchronous>, transform_indices = @transform_6, window_bounds = array<i64: 128, 128>}, {pipeline_mode = #tpu.pipeline_mode<synchronous>, transform_indices = @transform_7, window_bounds = array<i64: 128, 128>}, {pipeline_mode = #tpu.pipeline_mode<synchronous>, transform_indices = @transform_8, window_bounds = array<i64: 8, 512>}, {transform_indices = @transform_9, window_bounds = array<i64: 8, 128>}, {transform_indices = @transform_10, window_bounds = array<i64: 8, 128>}]} {
    %c0 = arith.constant 0 : index
    %c0_0 = arith.constant 0 : index
    %0 = vector.load %arg1[%c0, %c0_0] : memref<8x128xf32, #tpu.memory_space<vmem>>, vector<8x128xf32>
    %c0_1 = arith.constant 0 : index
    %c0_2 = arith.constant 0 : index
    %1 = vector.load %arg2[%c0_1, %c0_2] : memref<8x128xf32, #tpu.memory_space<vmem>>, vector<8x128xf32>
    %c0_3 = arith.constant 0 : index
    %c0_4 = arith.constant 0 : index
    %2 = vector.load %arg3[%c0_3, %c0_4] : memref<128x128xf32, #tpu.memory_space<vmem>>, vector<128x128xf32>
    %cst = arith.constant dense<0.000000e+00> : vector<8x128xf32>
    %3 = tpu.matmul %0, %2, %cst {dimension_numbers = #tpu.dot_dimension_numbers<[1], [0], [0], [1], [0, 0, 1, 1], [], []>} : vector<8x128xf32>, vector<128x128xf32>, vector<8x128xf32> -> vector<8x128xf32>
    %c0_5 = arith.constant 0 : index
    %c0_6 = arith.constant 0 : index
    %4 = vector.load %arg4[%c0_5, %c0_6] : memref<128x128xf32, #tpu.memory_space<vmem>>, vector<128x128xf32>
    %cst_7 = arith.constant dense<0.000000e+00> : vector<8x128xf32>
    %5 = tpu.matmul %1, %4, %cst_7 {dimension_numbers = #tpu.dot_dimension_numbers<[1], [0], [0], [1], [0, 0, 1, 1], [], []>} : vector<8x128xf32>, vector<128x128xf32>, vector<8x128xf32> -> vector<8x128xf32>
    %6 = arith.addf %3, %5 : vector<8x128xf32>
    %c0_8 = arith.constant 0 : index
    %c0_9 = arith.constant 0 : index
    %7 = vector.load %arg9[%c0_8, %c0_9] : memref<8x512xf32, #tpu.memory_space<vmem>>, vector<1x128xf32>
    %8 = vector.broadcast %7 : vector<1x128xf32> to vector<8x128xf32>
    %9 = arith.addf %6, %8 : vector<8x128xf32>
    %cst_10 = arith.constant 0.000000e+00 : f32
    %10 = vector.broadcast %cst_10 : f32 to vector<8x128xf32>
    %11 = arith.maximumf %9, %10 : vector<8x128xf32>
    %cst_11 = arith.constant dense<0.000000e+00> : vector<8xf32>
    %12 = vector.multi_reduction <add>, %11, %cst_11 [1] : vector<8x128xf32> to vector<8xf32>
    %13 = vector.shape_cast %12 : vector<8xf32> to vector<8x1xf32>
    %cst_12 = arith.constant 3.125000e-02 : f32
    %14 = vector.broadcast %cst_12 : f32 to vector<8x1xf32>
    %15 = arith.mulf %13, %14 : vector<8x1xf32>
    %16 = arith.mulf %11, %11 : vector<8x128xf32>
    %cst_13 = arith.constant dense<0.000000e+00> : vector<8xf32>
    %17 = vector.multi_reduction <add>, %16, %cst_13 [1] : vector<8x128xf32> to vector<8xf32>
    %18 = vector.shape_cast %17 : vector<8xf32> to vector<8x1xf32>
    %cst_14 = arith.constant 3.125000e-02 : f32
    %19 = vector.broadcast %cst_14 : f32 to vector<8x1xf32>
    %20 = arith.mulf %18, %19 : vector<8x1xf32>
    %21 = arith.mulf %15, %15 : vector<8x1xf32>
    %22 = arith.subf %20, %21 : vector<8x1xf32>
    %cst_15 = arith.constant 0.000000e+00 : f32
    %23 = vector.broadcast %cst_15 : f32 to vector<8x1xf32>
    %24 = arith.maximumf %22, %23 : vector<8x1xf32>
    %25 = vector.broadcast %15 : vector<8x1xf32> to vector<8x128xf32>
    %26 = arith.subf %11, %25 : vector<8x128xf32>
    %cst_16 = arith.constant 9.99999974E-6 : f32
    %27 = vector.broadcast %cst_16 : f32 to vector<8x1xf32>
    %28 = arith.addf %24, %27 : vector<8x1xf32>
    %29 = math.rsqrt %28 : vector<8x1xf32>
    %30 = vector.broadcast %29 : vector<8x1xf32> to vector<8x128xf32>
    %31 = arith.mulf %26, %30 : vector<8x128xf32>
    %c1 = arith.constant 1 : index
    %c0_17 = arith.constant 0 : index
    %32 = vector.load %arg9[%c1, %c0_17] : memref<8x512xf32, #tpu.memory_space<vmem>>, vector<1x128xf32>
    %33 = vector.broadcast %32 : vector<1x128xf32> to vector<8x128xf32>
    %34 = arith.mulf %31, %33 : vector<8x128xf32>
    %c2 = arith.constant 2 : index
    %c0_18 = arith.constant 0 : index
    %35 = vector.load %arg9[%c2, %c0_18] : memref<8x512xf32, #tpu.memory_space<vmem>>, vector<1x128xf32>
    %36 = vector.broadcast %35 : vector<1x128xf32> to vector<8x128xf32>
    %37 = arith.addf %34, %36 : vector<8x128xf32>
    %c0_19 = arith.constant 0 : index
    %c0_20 = arith.constant 0 : index
    %38 = vector.load %arg5[%c0_19, %c0_20] : memref<128x128xf32, #tpu.memory_space<vmem>>, vector<128x128xf32>
    %cst_21 = arith.constant dense<0.000000e+00> : vector<8x128xf32>
    %39 = tpu.matmul %37, %38, %cst_21 {dimension_numbers = #tpu.dot_dimension_numbers<[1], [0], [0], [1], [0, 0, 1, 1], [], []>} : vector<8x128xf32>, vector<128x128xf32>, vector<8x128xf32> -> vector<8x128xf32>
    %c0_22 = arith.constant 0 : index
    %c128 = arith.constant 128 : index
    %40 = vector.load %arg9[%c0_22, %c128] : memref<8x512xf32, #tpu.memory_space<vmem>>, vector<1x128xf32>
    %41 = vector.broadcast %40 : vector<1x128xf32> to vector<8x128xf32>
    %42 = arith.addf %39, %41 : vector<8x128xf32>
    %cst_23 = arith.constant 0.000000e+00 : f32
    %43 = vector.broadcast %cst_23 : f32 to vector<8x128xf32>
    %44 = arith.maximumf %42, %43 : vector<8x128xf32>
    %cst_24 = arith.constant dense<0.000000e+00> : vector<8xf32>
    %45 = vector.multi_reduction <add>, %44, %cst_24 [1] : vector<8x128xf32> to vector<8xf32>
    %46 = vector.shape_cast %45 : vector<8xf32> to vector<8x1xf32>
    %cst_25 = arith.constant 3.125000e-02 : f32
    %47 = vector.broadcast %cst_25 : f32 to vector<8x1xf32>
    %48 = arith.mulf %46, %47 : vector<8x1xf32>
    %49 = arith.mulf %44, %44 : vector<8x128xf32>
    %cst_26 = arith.constant dense<0.000000e+00> : vector<8xf32>
    %50 = vector.multi_reduction <add>, %49, %cst_26 [1] : vector<8x128xf32> to vector<8xf32>
    %51 = vector.shape_cast %50 : vector<8xf32> to vector<8x1xf32>
    %cst_27 = arith.constant 3.125000e-02 : f32
    %52 = vector.broadcast %cst_27 : f32 to vector<8x1xf32>
    %53 = arith.mulf %51, %52 : vector<8x1xf32>
    %54 = arith.mulf %48, %48 : vector<8x1xf32>
    %55 = arith.subf %53, %54 : vector<8x1xf32>
    %cst_28 = arith.constant 0.000000e+00 : f32
    %56 = vector.broadcast %cst_28 : f32 to vector<8x1xf32>
    %57 = arith.maximumf %55, %56 : vector<8x1xf32>
    %58 = vector.broadcast %48 : vector<8x1xf32> to vector<8x128xf32>
    %59 = arith.subf %44, %58 : vector<8x128xf32>
    %cst_29 = arith.constant 9.99999974E-6 : f32
    %60 = vector.broadcast %cst_29 : f32 to vector<8x1xf32>
    %61 = arith.addf %57, %60 : vector<8x1xf32>
    %62 = math.rsqrt %61 : vector<8x1xf32>
    %63 = vector.broadcast %62 : vector<8x1xf32> to vector<8x128xf32>
    %64 = arith.mulf %59, %63 : vector<8x128xf32>
    %c1_30 = arith.constant 1 : index
    %c128_31 = arith.constant 128 : index
    %65 = vector.load %arg9[%c1_30, %c128_31] : memref<8x512xf32, #tpu.memory_space<vmem>>, vector<1x128xf32>
    %66 = vector.broadcast %65 : vector<1x128xf32> to vector<8x128xf32>
    %67 = arith.mulf %64, %66 : vector<8x128xf32>
    %c2_32 = arith.constant 2 : index
    %c128_33 = arith.constant 128 : index
    %68 = vector.load %arg9[%c2_32, %c128_33] : memref<8x512xf32, #tpu.memory_space<vmem>>, vector<1x128xf32>
    %69 = vector.broadcast %68 : vector<1x128xf32> to vector<8x128xf32>
    %70 = arith.addf %67, %69 : vector<8x128xf32>
    %71 = arith.addf %70, %0 : vector<8x128xf32>
    %c0_34 = arith.constant 0 : index
    %c0_35 = arith.constant 0 : index
    %72 = vector.load %arg10[%c0_34, %c0_35] : memref<8x128xf32, #tpu.memory_space<vmem>>, vector<8x128xf32>
    tpu.vector_store %arg10[%c0_34, %c0_35], %71 {strides = array<i32>} : memref<8x128xf32, #tpu.memory_space<vmem>>, vector<8x128xf32>,
    %c0_36 = arith.constant 0 : index
    %c0_37 = arith.constant 0 : index
    %73 = vector.load %arg6[%c0_36, %c0_37] : memref<128x128xf32, #tpu.memory_space<vmem>>, vector<128x128xf32>
    %cst_38 = arith.constant dense<0.000000e+00> : vector<8x128xf32>
    %74 = tpu.matmul %71, %73, %cst_38 {dimension_numbers = #tpu.dot_dimension_numbers<[1], [0], [0], [1], [0, 0, 1, 1], [], []>} : vector<8x128xf32>, vector<128x128xf32>, vector<8x128xf32> -> vector<8x128xf32>
    %c0_39 = arith.constant 0 : index
    %c0_40 = arith.constant 0 : index
    %75 = vector.load %arg7[%c0_39, %c0_40] : memref<128x128xf32, #tpu.memory_space<vmem>>, vector<128x128xf32>
    %cst_41 = arith.constant dense<0.000000e+00> : vector<8x128xf32>
    %76 = tpu.matmul %1, %75, %cst_41 {dimension_numbers = #tpu.dot_dimension_numbers<[1], [0], [0], [1], [0, 0, 1, 1], [], []>} : vector<8x128xf32>, vector<128x128xf32>, vector<8x128xf32> -> vector<8x128xf32>
    %77 = arith.addf %74, %76 : vector<8x128xf32>
    %c0_42 = arith.constant 0 : index
    %c256 = arith.constant 256 : index
    %78 = vector.load %arg9[%c0_42, %c256] : memref<8x512xf32, #tpu.memory_space<vmem>>, vector<1x128xf32>
    %79 = vector.broadcast %78 : vector<1x128xf32> to vector<8x128xf32>
    %80 = arith.addf %77, %79 : vector<8x128xf32>
    %cst_43 = arith.constant 0.000000e+00 : f32
    %81 = vector.broadcast %cst_43 : f32 to vector<8x128xf32>
    %82 = arith.maximumf %80, %81 : vector<8x128xf32>
    %cst_44 = arith.constant dense<0.000000e+00> : vector<8xf32>
    %83 = vector.multi_reduction <add>, %82, %cst_44 [1] : vector<8x128xf32> to vector<8xf32>
    %84 = vector.shape_cast %83 : vector<8xf32> to vector<8x1xf32>
    %cst_45 = arith.constant 3.125000e-02 : f32
    %85 = vector.broadcast %cst_45 : f32 to vector<8x1xf32>
    %86 = arith.mulf %84, %85 : vector<8x1xf32>
    %87 = arith.mulf %82, %82 : vector<8x128xf32>
    %cst_46 = arith.constant dense<0.000000e+00> : vector<8xf32>
    %88 = vector.multi_reduction <add>, %87, %cst_46 [1] : vector<8x128xf32> to vector<8xf32>
    %89 = vector.shape_cast %88 : vector<8xf32> to vector<8x1xf32>
    %cst_47 = arith.constant 3.125000e-02 : f32
    %90 = vector.broadcast %cst_47 : f32 to vector<8x1xf32>
    %91 = arith.mulf %89, %90 : vector<8x1xf32>
    %92 = arith.mulf %86, %86 : vector<8x1xf32>
    %93 = arith.subf %91, %92 : vector<8x1xf32>
    %cst_48 = arith.constant 0.000000e+00 : f32
    %94 = vector.broadcast %cst_48 : f32 to vector<8x1xf32>
    %95 = arith.maximumf %93, %94 : vector<8x1xf32>
    %96 = vector.broadcast %86 : vector<8x1xf32> to vector<8x128xf32>
    %97 = arith.subf %82, %96 : vector<8x128xf32>
    %cst_49 = arith.constant 9.99999974E-6 : f32
    %98 = vector.broadcast %cst_49 : f32 to vector<8x1xf32>
    %99 = arith.addf %95, %98 : vector<8x1xf32>
    %100 = math.rsqrt %99 : vector<8x1xf32>
    %101 = vector.broadcast %100 : vector<8x1xf32> to vector<8x128xf32>
    %102 = arith.mulf %97, %101 : vector<8x128xf32>
    %c1_50 = arith.constant 1 : index
    %c256_51 = arith.constant 256 : index
    %103 = vector.load %arg9[%c1_50, %c256_51] : memref<8x512xf32, #tpu.memory_space<vmem>>, vector<1x128xf32>
    %104 = vector.broadcast %103 : vector<1x128xf32> to vector<8x128xf32>
    %105 = arith.mulf %102, %104 : vector<8x128xf32>
    %c2_52 = arith.constant 2 : index
    %c256_53 = arith.constant 256 : index
    %106 = vector.load %arg9[%c2_52, %c256_53] : memref<8x512xf32, #tpu.memory_space<vmem>>, vector<1x128xf32>
    %107 = vector.broadcast %106 : vector<1x128xf32> to vector<8x128xf32>
    %108 = arith.addf %105, %107 : vector<8x128xf32>
    %c0_54 = arith.constant 0 : index
    %c0_55 = arith.constant 0 : index
    %109 = vector.load %arg8[%c0_54, %c0_55] : memref<128x128xf32, #tpu.memory_space<vmem>>, vector<128x128xf32>
    %cst_56 = arith.constant dense<0.000000e+00> : vector<8x128xf32>
    %110 = tpu.matmul %108, %109, %cst_56 {dimension_numbers = #tpu.dot_dimension_numbers<[1], [0], [0], [1], [0, 0, 1, 1], [], []>} : vector<8x128xf32>, vector<128x128xf32>, vector<8x128xf32> -> vector<8x128xf32>
    %c0_57 = arith.constant 0 : index
    %c384 = arith.constant 384 : index
    %111 = vector.load %arg9[%c0_57, %c384] : memref<8x512xf32, #tpu.memory_space<vmem>>, vector<1x128xf32>
    %112 = vector.broadcast %111 : vector<1x128xf32> to vector<8x128xf32>
    %113 = arith.addf %110, %112 : vector<8x128xf32>
    %c0_58 = arith.constant 0 : index
    %c0_59 = arith.constant 0 : index
    %114 = vector.load %arg11[%c0_58, %c0_59] : memref<8x128xf32, #tpu.memory_space<vmem>>, vector<8x128xf32>
    tpu.vector_store %arg11[%c0_58, %c0_59], %113 {strides = array<i32>} : memref<8x128xf32, #tpu.memory_space<vmem>>, vector<8x128xf32>,
    return
  }
  func.func @transform_0(%arg0: i32) -> (i32, i32) {
    %c0_i32 = arith.constant 0 : i32
    %c0_i32_0 = arith.constant 0 : i32
    return %arg0, %c0_i32 : i32, i32
  }
  func.func @transform_1(%arg0: i32) -> (i32, i32) {
    %c0_i32 = arith.constant 0 : i32
    %c0_i32_0 = arith.constant 0 : i32
    return %arg0, %c0_i32 : i32, i32
  }
  func.func @transform_2(%arg0: i32) -> (i32, i32) {
    %c0_i32 = arith.constant 0 : i32
    %c0_i32_0 = arith.constant 0 : i32
    %c0_i32_1 = arith.constant 0 : i32
    return %c0_i32, %c0_i32_0 : i32, i32
  }
  func.func @transform_3(%arg0: i32) -> (i32, i32) {
    %c0_i32 = arith.constant 0 : i32
    %c0_i32_0 = arith.constant 0 : i32
    %c0_i32_1 = arith.constant 0 : i32
    return %c0_i32, %c0_i32_0 : i32, i32
  }
  func.func @transform_4(%arg0: i32) -> (i32, i32) {
    %c0_i32 = arith.constant 0 : i32
    %c0_i32_0 = arith.constant 0 : i32
    %c0_i32_1 = arith.constant 0 : i32
    return %c0_i32, %c0_i32_0 : i32, i32
  }
  func.func @transform_5(%arg0: i32) -> (i32, i32) {
    %c0_i32 = arith.constant 0 : i32
    %c0_i32_0 = arith.constant 0 : i32
    %c0_i32_1 = arith.constant 0 : i32
    return %c0_i32, %c0_i32_0 : i32, i32
  }
  func.func @transform_6(%arg0: i32) -> (i32, i32) {
    %c0_i32 = arith.constant 0 : i32
    %c0_i32_0 = arith.constant 0 : i32
    %c0_i32_1 = arith.constant 0 : i32
    return %c0_i32, %c0_i32_0 : i32, i32
  }
  func.func @transform_7(%arg0: i32) -> (i32, i32) {
    %c0_i32 = arith.constant 0 : i32
    %c0_i32_0 = arith.constant 0 : i32
    %c0_i32_1 = arith.constant 0 : i32
    return %c0_i32, %c0_i32_0 : i32, i32
  }
  func.func @transform_8(%arg0: i32) -> (i32, i32) {
    %c0_i32 = arith.constant 0 : i32
    %c0_i32_0 = arith.constant 0 : i32
    %c0_i32_1 = arith.constant 0 : i32
    return %c0_i32, %c0_i32_0 : i32, i32
  }
  func.func @transform_9(%arg0: i32) -> (i32, i32) {
    %c0_i32 = arith.constant 0 : i32
    %c0_i32_0 = arith.constant 0 : i32
    return %arg0, %c0_i32 : i32, i32
  }
  func.func @transform_10(%arg0: i32) -> (i32, i32) {
    %c0_i32 = arith.constant 0 : i32
    %c0_i32_0 = arith.constant 0 : i32
    return %arg0, %c0_i32 : i32, i32
  }
}

</mosaic_0001>

<llo_original>
// kernel: forward.1
$region0: #{forward.1}
  #allocation0 [shape = 'u32[]', space=smem, size = 0x4, offset = 0x4, fixed_abs, tag = 'smem constant byte address 0x4 - core index']
  #allocation1 [shape = 'u32[144,128]{1,0:T(1,128)}', space=vmem, size = 0x12000, scoped, tag = 'internal scratch']
  %s0 = inlined_call_operand.vmem [shape: f32[8,128], index: 0, kind: input, shape index: {}]
  %s1 = inlined_call_operand.vmem [shape: f32[8,128], index: 1, kind: input, shape index: {}]
  %s2 = inlined_call_operand.hbm [shape: f32[128,128], index: 2, kind: input, shape index: {}]
  %s3 = inlined_call_operand.hbm [shape: f32[128,128], index: 3, kind: input, shape index: {}]
  %s4 = inlined_call_operand.hbm [shape: f32[128,128], index: 4, kind: input, shape index: {}]
  %s5 = inlined_call_operand.hbm [shape: f32[128,128], index: 5, kind: input, shape index: {}]
  %s6 = inlined_call_operand.hbm [shape: f32[128,128], index: 6, kind: input, shape index: {}]
  %s7 = inlined_call_operand.hbm [shape: f32[128,128], index: 7, kind: input, shape index: {}]
  %s8 = inlined_call_operand.vmem [shape: f32[8,512], index: 8, kind: input, shape index: {}]
  %s9 = inlined_call_operand.hbm [shape: f32[8,128], index: 9, kind: output, shape index: {0}]
  %s10 = inlined_call_operand.hbm [shape: f32[8,128], index: 10, kind: output, shape index: {1}]
  %11 = xla_tuple %s9, %s10
  %s12 = sld [smem:[#allocation0]]
  $region78: #{forward.1} parent=0
    _
  %s14 = ssub.s32 1, %s12
  %s15 = scalar_select 0, %s14, %s12
  $region1: #{forward.1} parent=0
    #allocation2 [shape = 'u8[65536]{0}', space=vmem, size = 0x10000, scoped, tag = 'input window, operand 2, single buffered']
    #allocation3 [shape = 's32[1]{0}', space=sflag, size = 0x4, scoped, tag = 'scoped memory for forward.1']
    #allocation4 [shape = 's32[1]{0}', space=sflag, size = 0x4, scoped, tag = 'scoped memory for forward.1']
    #allocation5 [shape = 'u8[65536]{0}', space=vmem, size = 0x10000, scoped, tag = 'input window, operand 3, single buffered']
    #allocation6 [shape = 's32[1]{0}', space=sflag, size = 0x4, scoped, tag = 'scoped memory for forward.1']
    #allocation7 [shape = 'u8[65536]{0}', space=vmem, size = 0x10000, scoped, tag = 'input window, operand 4, single buffered']
    #allocation8 [shape = 'u8[65536]{0}', space=vmem, size = 0x10000, scoped, tag = 'input window, operand 5, single buffered']
    #allocation9 [shape = 's32[1]{0}', space=sflag, size = 0x4, scoped, tag = 'scoped memory for forward.1']
    #allocation10 [shape = 'u8[65536]{0}', space=vmem, size = 0x10000, scoped, tag = 'input window, operand 6, single buffered']
    #allocation11 [shape = 'u8[65536]{0}', space=vmem, size = 0x10000, scoped, tag = 'input window, operand 7, single buffered']
    #allocation12 [shape = 's32[1]{0}', space=sflag, size = 0x4, scoped, tag = 'scoped memory for forward.1']
    #allocation13 [shape = 'u8[4096]{0}', space=vmem, size = 0x1000, scoped, tag = 'output window, operand 0, single buffered']
    #allocation14 [shape = 'u8[4096]{0}', space=vmem, size = 0x1000, scoped, tag = 'output window, operand 1, single buffered']
    #allocation15 [shape = 's32[1]{0}', space=sflag, size = 0x4, scoped, tag = 'scoped memory for forward.1']
    %16 = vsyncpa [#allocation3], 0
    %17 = vsyncpa [#allocation6], 0
    %18 = vsyncpa [#allocation9], 0
    %19 = vsyncpa [#allocation12], 0
    %20 = vsyncpa [#allocation4], 0
    %21 = vsyncpa [#allocation15], 0
    // Predicated region
    $region2: #{forward.1} parent=1 // pred_check
      _
    $region3: #{forward.1} parent=1 // pred_check_branch
      %23 = sbr.rel (0) target = $region5
    $region4: #{forward.1} parent=1 // pred_region
      _
    $region5: #{forward.1} parent=1 // pred_fallthru
      _
    // Predicated region
    $region6: #{forward.1} parent=1 // pred_check
      _
    $region7: #{forward.1} parent=1 // pred_check_branch
      %25 = sbr.rel (0) target = $region9
    $region8: #{forward.1} parent=1 // pred_region
      _
    $region9: #{forward.1} parent=1 // pred_fallthru
      _
    // Predicated region
    $region10: #{forward.1} parent=1 // pred_check
      _
    $region11: #{forward.1} parent=1 // pred_check_branch
      %27 = sbr.rel (0) target = $region13
    $region12: #{forward.1} parent=1 // pred_region
      %s29 = ssub.s32 2048, 2048
      %30 = vsyncadd [#allocation3], %s29
      %s31 = sshll.u32 [#allocation2], 4
      %s32 = int_to_ptr.vmem [resolvable:$true] %s31
      %37 = dma.hbm_to_vmem [thread:$0]  %s2, 2048, %s32, [#allocation3], 128, 128, 8
    $region13: #{forward.1} parent=1 // pred_fallthru
      _
    // Predicated region
    $region14: #{forward.1} parent=1 // pred_check
      _
    $region15: #{forward.1} parent=1 // pred_check_branch
      %39 = sbr.rel (0) target = $region17
    $region16: #{forward.1} parent=1 // pred_region
      %s41 = ssub.s32 2048, 2048
      %42 = vsyncadd [#allocation6], %s41
      %s43 = sshll.u32 [#allocation5], 4
      %s44 = int_to_ptr.vmem [resolvable:$true] %s43
      %49 = dma.hbm_to_vmem [thread:$0]  %s3, 2048, %s44, [#allocation6], 128, 128, 8
    $region17: #{forward.1} parent=1 // pred_fallthru
      _
    // Predicated region
    $region18: #{forward.1} parent=1 // pred_check
      _
    $region19: #{forward.1} parent=1 // pred_check_branch
      %51 = sbr.rel (0) target = $region21
    $region20: #{forward.1} parent=1 // pred_region
      %s53 = ssub.s32 2048, 2048
      %54 = vsyncadd [#allocation6], %s53
      %s55 = sshll.u32 [#allocation7], 4
      %s56 = int_to_ptr.vmem [resolvable:$true] %s55
      %61 = dma.hbm_to_vmem [thread:$0]  %s4, 2048, %s56, [#allocation6], 128, 128, 8
    $region21: #{forward.1} parent=1 // pred_fallthru
      _
    // Predicated region
    $region22: #{forward.1} parent=1 // pred_check
      _
    $region23: #{forward.1} parent=1 // pred_check_branch
      %63 = sbr.rel (0) target = $region25
    $region24: #{forward.1} parent=1 // pred_region
      %s65 = ssub.s32 2048, 2048
      %66 = vsyncadd [#allocation9], %s65
      %s67 = sshll.u32 [#allocation8], 4
      %s68 = int_to_ptr.vmem [resolvable:$true] %s67
      %73 = dma.hbm_to_vmem [thread:$0]  %s5, 2048, %s68, [#allocation9], 128, 128, 8
    $region25: #{forward.1} parent=1 // pred_fallthru
      _
    // Predicated region
    $region26: #{forward.1} parent=1 // pred_check
      _
    $region27: #{forward.1} parent=1 // pred_check_branch
      %75 = sbr.rel (0) target = $region29
    $region28: #{forward.1} parent=1 // pred_region
      %s77 = ssub.s32 2048, 2048
      %78 = vsyncadd [#allocation9], %s77
      %s79 = sshll.u32 [#allocation10], 4
      %s80 = int_to_ptr.vmem [resolvable:$true] %s79
      %85 = dma.hbm_to_vmem [thread:$0]  %s6, 2048, %s80, [#allocation9], 128, 128, 8
    $region29: #{forward.1} parent=1 // pred_fallthru
      _
    // Predicated region
    $region30: #{forward.1} parent=1 // pred_check
      _
    $region31: #{forward.1} parent=1 // pred_check_branch
      %87 = sbr.rel (0) target = $region33
    $region32: #{forward.1} parent=1 // pred_region
      %s89 = ssub.s32 2048, 2048
      %90 = vsyncadd [#allocation12], %s89
      %s91 = sshll.u32 [#allocation11], 4
      %s92 = int_to_ptr.vmem [resolvable:$true] %s91
      %97 = dma.hbm_to_vmem [thread:$0]  %s7, 2048, %s92, [#allocation12], 128, 128, 8
    $region33: #{forward.1} parent=1 // pred_fallthru
      _
    // Predicated region
    $region34: #{forward.1} parent=1 // pred_check
      _
    $region35: #{forward.1} parent=1 // pred_check_branch
      %99 = sbr.rel (0) target = $region37
    $region36: #{forward.1} parent=1 // pred_region
      _
    $region37: #{forward.1} parent=1 // pred_fallthru
      _
    // Predicated region
    $region38: #{forward.1} parent=1 // pred_check
      _
    $region39: #{forward.1} parent=1 // pred_check_branch
      %101 = sbr.rel (0) target = $region41
    $region40: #{forward.1} parent=1 // pred_region
      %102 = dma.done [#allocation3], 2048
    $region41: #{forward.1} parent=1 // pred_fallthru
      _
    // Predicated region
    $region42: #{forward.1} parent=1 // pred_check
      _
    $region43: #{forward.1} parent=1 // pred_check_branch
      %104 = sbr.rel (0) target = $region45
    $region44: #{forward.1} parent=1 // pred_region
      %105 = dma.done [#allocation6], 2048
    $region45: #{forward.1} parent=1 // pred_fallthru
      _
    // Predicated region
    $region46: #{forward.1} parent=1 // pred_check
      _
    $region47: #{forward.1} parent=1 // pred_check_branch
      %107 = sbr.rel (0) target = $region49
    $region48: #{forward.1} parent=1 // pred_region
      %108 = dma.done [#allocation6], 2048
    $region49: #{forward.1} parent=1 // pred_fallthru
      _
    // Predicated region
    $region50: #{forward.1} parent=1 // pred_check
      _
    $region51: #{forward.1} parent=1 // pred_check_branch
      %110 = sbr.rel (0) target = $region53
    $region52: #{forward.1} parent=1 // pred_region
      %111 = dma.done [#allocation9], 2048
    $region53: #{forward.1} parent=1 // pred_fallthru
      _
    // Predicated region
    $region54: #{forward.1} parent=1 // pred_check
      _
    $region55: #{forward.1} parent=1 // pred_check_branch
      %113 = sbr.rel (0) target = $region57
    $region56: #{forward.1} parent=1 // pred_region
      %114 = dma.done [#allocation9], 2048
    $region57: #{forward.1} parent=1 // pred_fallthru
      _
    // Predicated region
    $region58: #{forward.1} parent=1 // pred_check
      _
    $region59: #{forward.1} parent=1 // pred_check_branch
      %116 = sbr.rel (0) target = $region61
    $region60: #{forward.1} parent=1 // pred_region
      %117 = dma.done [#allocation12], 2048
    $region61: #{forward.1} parent=1 // pred_fallthru
      _
    %v118 = vld [vmem:[%s0] sm:$0xff]
    %v119 = vld [vmem:[%s1] sm:$0xff]
    %v120 = vld [vmem:[#allocation2] sm:$0xff]
    %v121 = vld [vmem:[#allocation2 + $0x8] sm:$0xff]
    %v122 = vld [vmem:[#allocation2 + $0x10] sm:$0xff]
    %v123 = vld [vmem:[#allocation2 + $0x18] sm:$0xff]
    %v124 = vld [vmem:[#allocation2 + $0x20] sm:$0xff]
    %v125 = vld [vmem:[#allocation2 + $0x28] sm:$0xff]
    %v126 = vld [vmem:[#allocation2 + $0x30] sm:$0xff]
    %v127 = vld [vmem:[#allocation2 + $0x38] sm:$0xff]
    %v128 = vld [vmem:[#allocation2 + $0x40] sm:$0xff]
    %v129 = vld [vmem:[#allocation2 + $0x48] sm:$0xff]
    %v130 = vld [vmem:[#allocation2 + $0x50] sm:$0xff]
    %v131 = vld [vmem:[#allocation2 + $0x58] sm:$0xff]
    %v132 = vld [vmem:[#allocation2 + $0x60] sm:$0xff]
    %v133 = vld [vmem:[#allocation2 + $0x68] sm:$0xff]
    %v134 = vld [vmem:[#allocation2 + $0x70] sm:$0xff]
    %v135 = vld [vmem:[#allocation2 + $0x78] sm:$0xff]
    %v136 = vld [vmem:[#allocation5] sm:$0xff]
    %v137 = vld [vmem:[#allocation5 + $0x8] sm:$0xff]
    %v138 = vld [vmem:[#allocation5 + $0x10] sm:$0xff]
    %v139 = vld [vmem:[#allocation5 + $0x18] sm:$0xff]
    %v140 = vld [vmem:[#allocation5 + $0x20] sm:$0xff]
    %v141 = vld [vmem:[#allocation5 + $0x28] sm:$0xff]
    %v142 = vld [vmem:[#allocation5 + $0x30] sm:$0xff]
    %v143 = vld [vmem:[#allocation5 + $0x38] sm:$0xff]
    %v144 = vld [vmem:[#allocation5 + $0x40] sm:$0xff]
    %v145 = vld [vmem:[#allocation5 + $0x48] sm:$0xff]
    %v146 = vld [vmem:[#allocation5 + $0x50] sm:$0xff]
    %v147 = vld [vmem:[#allocation5 + $0x58] sm:$0xff]
    %v148 = vld [vmem:[#allocation5 + $0x60] sm:$0xff]
    %v149 = vld [vmem:[#allocation5 + $0x68] sm:$0xff]
    %v150 = vld [vmem:[#allocation5 + $0x70] sm:$0xff]
    %v151 = vld [vmem:[#allocation5 + $0x78] sm:$0xff]
    %152 = vmatprep.subr.mxu0 0.0
    %153 = vmatpush1.msra.mxu0 %v136
    %154 = vmatprep.subr.mxu0 0.0
    %155 = vmatpush1.msra.mxu0 %v137
    %156 = vmatprep.subr.mxu0 0.0
    %157 = vmatpush1.msra.mxu0 %v138
    %158 = vmatprep.subr.mxu0 0.0
    %159 = vmatpush1.msra.mxu0 %v139
    %160 = vmatprep.subr.mxu0 0.0
    %161 = vmatpush1.msra.mxu0 %v140
    %162 = vmatprep.subr.mxu0 0.0
    %163 = vmatpush1.msra.mxu0 %v141
    %164 = vmatprep.subr.mxu0 0.0
    %165 = vmatpush1.msra.mxu0 %v142
    %166 = vmatprep.subr.mxu0 0.0
    %167 = vmatpush1.msra.mxu0 %v143
    %168 = vmatprep.subr.mxu0 0.0
    %169 = vmatpush1.msra.mxu0 %v144
    %170 = vmatprep.subr.mxu0 0.0
    %171 = vmatpush1.msra.mxu0 %v145
    %172 = vmatprep.subr.mxu0 0.0
    %173 = vmatpush1.msra.mxu0 %v146
    %174 = vmatprep.subr.mxu0 0.0
    %175 = vmatpush1.msra.mxu0 %v147
    %176 = vmatprep.subr.mxu0 0.0
    %177 = vmatpush1.msra.mxu0 %v148
    %178 = vmatprep.subr.mxu0 0.0
    %179 = vmatpush1.msra.mxu0 %v149
    %180 = vmatprep.subr.mxu0 0.0
    %181 = vmatpush1.msra.mxu0 %v150
    %182 = vmatprep.subr.mxu0 0.0
    %183 = vmatpush1.msra.mxu0 %v151
    %184 = vmatprep.subr.mxu0 0.0
    %185 = vmatpush1.msra.mxu0 0.0
    %186 = vmatprep.subr.mxu0 0.0
    %187 = vmatpush1.msra.mxu0 0.0
    %188 = vmatprep.subr.mxu0 0.0
    %189 = vmatpush1.msra.mxu0 0.0
    %190 = vmatprep.subr.mxu0 0.0
    %191 = vmatpush1.msra.mxu0 0.0
    %192 = vmatprep.subr.mxu0 0.0
    %193 = vmatpush1.msra.mxu0 0.0
    %194 = vmatprep.subr.mxu0 0.0
    %195 = vmatpush1.msra.mxu0 0.0
    %196 = vmatprep.subr.mxu0 0.0
    %197 = vmatpush1.msra.mxu0 0.0
    %198 = vmatprep.subr.mxu0 0.0
    %199 = vmatpush1.msra.mxu0 0.0
    %200 = vmatprep.subr.mxu0 0.0
    %201 = vmatpush1.msra.mxu0 0.0
    %202 = vmatprep.subr.mxu0 0.0
    %203 = vmatpush1.msra.mxu0 0.0
    %204 = vmatprep.subr.mxu0 0.0
    %205 = vmatpush1.msra.mxu0 0.0
    %206 = vmatprep.subr.mxu0 0.0
    %207 = vmatpush1.msra.mxu0 0.0
    %208 = vmatprep.subr.mxu0 0.0
    %209 = vmatpush1.msra.mxu0 0.0
    %210 = vmatprep.subr.mxu0 0.0
    %211 = vmatpush1.msra.mxu0 0.0
    %212 = vmatprep.subr.mxu0 0.0
    %213 = vmatpush1.msra.mxu0 0.0
    %214 = vmatprep.subr.mxu0 0.0
    %215 = vmatpush1.msra.mxu0 0.0
    %216 = vmatprep.mubr.f32.mxu0 0.0
    %217 = vmatmul.mubr.f32.gmra.mrb[0].mxu0 %v119
    %v218 = vpop.f32.mrb[0].mxu0
    %v219 = vadd.f32 0.0, %v218
    %v220 = vpop.f32.mrb[0].mxu0
    %221 = vdwg.mxu0
    %222 = vmatprep.subr.mxu0 0.0
    %223 = vmatpush1.msra.mxu0 %v120
    %224 = vmatprep.subr.mxu0 0.0
    %225 = vmatpush1.msra.mxu0 %v121
    %226 = vmatprep.subr.mxu0 0.0
    %227 = vmatpush1.msra.mxu0 %v122
    %228 = vmatprep.subr.mxu0 0.0
    %229 = vmatpush1.msra.mxu0 %v123
    %230 = vmatprep.subr.mxu0 0.0
    %231 = vmatpush1.msra.mxu0 %v124
    %232 = vmatprep.subr.mxu0 0.0
    %233 = vmatpush1.msra.mxu0 %v125
    %234 = vmatprep.subr.mxu0 0.0
    %235 = vmatpush1.msra.mxu0 %v126
    %236 = vmatprep.subr.mxu0 0.0
    %237 = vmatpush1.msra.mxu0 %v127
    %238 = vmatprep.subr.mxu0 0.0
    %239 = vmatpush1.msra.mxu0 %v128
    %240 = vmatprep.subr.mxu0 0.0
    %241 = vmatpush1.msra.mxu0 %v129
    %242 = vmatprep.subr.mxu0 0.0
    %243 = vmatpush1.msra.mxu0 %v130
    %244 = vmatprep.subr.mxu0 0.0
    %245 = vmatpush1.msra.mxu0 %v131
    %246 = vmatprep.subr.mxu0 0.0
    %247 = vmatpush1.msra.mxu0 %v132
    %248 = vmatprep.subr.mxu0 0.0
    %249 = vmatpush1.msra.mxu0 %v133
    %250 = vmatprep.subr.mxu0 0.0
    %251 = vmatpush1.msra.mxu0 %v134
    %252 = vmatprep.subr.mxu0 0.0
    %253 = vmatpush1.msra.mxu0 %v135
    %254 = vmatprep.subr.mxu0 0.0
    %255 = vmatpush1.msra.mxu0 0.0
    %256 = vmatprep.subr.mxu0 0.0
    %257 = vmatpush1.msra.mxu0 0.0
    %258 = vmatprep.subr.mxu0 0.0
    %259 = vmatpush1.msra.mxu0 0.0
    %260 = vmatprep.subr.mxu0 0.0
    %261 = vmatpush1.msra.mxu0 0.0
    %262 = vmatprep.subr.mxu0 0.0
    %263 = vmatpush1.msra.mxu0 0.0
    %264 = vmatprep.subr.mxu0 0.0
    %265 = vmatpush1.msra.mxu0 0.0
    %266 = vmatprep.subr.mxu0 0.0
    %267 = vmatpush1.msra.mxu0 0.0
    %268 = vmatprep.subr.mxu0 0.0
    %269 = vmatpush1.msra.mxu0 0.0
    %270 = vmatprep.subr.mxu0 0.0
    %271 = vmatpush1.msra.mxu0 0.0
    %272 = vmatprep.subr.mxu0 0.0
    %273 = vmatpush1.msra.mxu0 0.0
    %274 = vmatprep.subr.mxu0 0.0
    %275 = vmatpush1.msra.mxu0 0.0
    %276 = vmatprep.subr.mxu0 0.0
    %277 = vmatpush1.msra.mxu0 0.0
    %278 = vmatprep.subr.mxu0 0.0
    %279 = vmatpush1.msra.mxu0 0.0
    %280 = vmatprep.subr.mxu0 0.0
    %281 = vmatpush1.msra.mxu0 0.0
    %282 = vmatprep.subr.mxu0 0.0
    %283 = vmatpush1.msra.mxu0 0.0
    %284 = vmatprep.subr.mxu0 0.0
    %285 = vmatpush1.msra.mxu0 0.0
    %286 = vmatprep.mubr.f32.mxu0 0.0
    %287 = vmatmul.mubr.f32.gmra.mrb[0].mxu0 %v118
    %v288 = vpop.f32.mrb[0].mxu0
    %v289 = vadd.f32 %v219, %v288
    %v290 = vpop.f32.mrb[0].mxu0
    %291 = vdwg.mxu0
    %v292 = vld [vmem:[%s8] ss:$0 sm:$0xff]
    %v293 = vadd.f32 %v289, %v292
    %v294 = vmax.f32 %v293, 0.0
    %295 = vadd.xlane.f32.xlu0 %v294
    %v296 = vpop.xlane.xlu0 %295
    %v297 = vmul.f32 %v296, 0.03125
    %v298 = vmul.f32 %v294, %v294
    %299 = vadd.xlane.f32.xlu0 %v298
    %v300 = vpop.xlane.xlu0 %299
    %v301 = vmul.f32 %v300, 0.03125
    %v302 = vmul.f32 %v297, %v297
    %v303 = vsub.f32 %v301, %v302
    %v304 = vmax.f32 %v303, 0.0
    %v305 = vsub.f32 %v294, %v297
    %v306 = vadd.f32 %v304, 1e-05
    %v307 = vrsqrt.pop %v306
    %v308 = vmul.f32 %v305, %v307
    %v309 = vld [vmem:[%s8 + $0x1] ss:$0 sm:$0xff]
    %v310 = vmul.f32 %v308, %v309
    %v311 = vld [vmem:[%s8 + $0x2] ss:$0 sm:$0xff]
    %v312 = vadd.f32 %v310, %v311
    %v313 = vld [vmem:[#allocation7] sm:$0xff]
    %v314 = vld [vmem:[#allocation7 + $0x8] sm:$0xff]
    %v315 = vld [vmem:[#allocation7 + $0x10] sm:$0xff]
    %v316 = vld [vmem:[#allocation7 + $0x18] sm:$0xff]
    %v317 = vld [vmem:[#allocation7 + $0x20] sm:$0xff]
    %v318 = vld [vmem:[#allocation7 + $0x28] sm:$0xff]
    %v319 = vld [vmem:[#allocation7 + $0x30] sm:$0xff]
    %v320 = vld [vmem:[#allocation7 + $0x38] sm:$0xff]
    %v321 = vld [vmem:[#allocation7 + $0x40] sm:$0xff]
    %v322 = vld [vmem:[#allocation7 + $0x48] sm:$0xff]
    %v323 = vld [vmem:[#allocation7 + $0x50] sm:$0xff]
    %v324 = vld [vmem:[#allocation7 + $0x58] sm:$0xff]
    %v325 = vld [vmem:[#allocation7 + $0x60] sm:$0xff]
    %v326 = vld [vmem:[#allocation7 + $0x68] sm:$0xff]
    %v327 = vld [vmem:[#allocation7 + $0x70] sm:$0xff]
    %v328 = vld [vmem:[#allocation7 + $0x78] sm:$0xff]
    %v329 = vld [vmem:[%s8 + $0x8] ss:$0 sm:$0xff]
    %330 = vmatprep.subr.mxu0 0.0
    %331 = vmatpush1.msra.mxu0 %v313
    %332 = vmatprep.subr.mxu0 0.0
    %333 = vmatpush1.msra.mxu0 %v314
    %334 = vmatprep.subr.mxu0 0.0
    %335 = vmatpush1.msra.mxu0 %v315
    %336 = vmatprep.subr.mxu0 0.0
    %337 = vmatpush1.msra.mxu0 %v316
    %338 = vmatprep.subr.mxu0 0.0
    %339 = vmatpush1.msra.mxu0 %v317
    %340 = vmatprep.subr.mxu0 0.0
    %341 = vmatpush1.msra.mxu0 %v318
    %342 = vmatprep.subr.mxu0 0.0
    %343 = vmatpush1.msra.mxu0 %v319
    %344 = vmatprep.subr.mxu0 0.0
    %345 = vmatpush1.msra.mxu0 %v320
    %346 = vmatprep.subr.mxu0 0.0
    %347 = vmatpush1.msra.mxu0 %v321
    %348 = vmatprep.subr.mxu0 0.0
    %349 = vmatpush1.msra.mxu0 %v322
    %350 = vmatprep.subr.mxu0 0.0
    %351 = vmatpush1.msra.mxu0 %v323
    %352 = vmatprep.subr.mxu0 0.0
    %353 = vmatpush1.msra.mxu0 %v324
    %354 = vmatprep.subr.mxu0 0.0
    %355 = vmatpush1.msra.mxu0 %v325
    %356 = vmatprep.subr.mxu0 0.0
    %357 = vmatpush1.msra.mxu0 %v326
    %358 = vmatprep.subr.mxu0 0.0
    %359 = vmatpush1.msra.mxu0 %v327
    %360 = vmatprep.subr.mxu0 0.0
    %361 = vmatpush1.msra.mxu0 %v328
    %362 = vmatprep.subr.mxu0 0.0
    %363 = vmatpush1.msra.mxu0 0.0
    %364 = vmatprep.subr.mxu0 0.0
    %365 = vmatpush1.msra.mxu0 0.0
    %366 = vmatprep.subr.mxu0 0.0
    %367 = vmatpush1.msra.mxu0 0.0
    %368 = vmatprep.subr.mxu0 0.0
    %369 = vmatpush1.msra.mxu0 0.0
    %370 = vmatprep.subr.mxu0 0.0
    %371 = vmatpush1.msra.mxu0 0.0
    %372 = vmatprep.subr.mxu0 0.0
    %373 = vmatpush1.msra.mxu0 0.0
    %374 = vmatprep.subr.mxu0 0.0
    %375 = vmatpush1.msra.mxu0 0.0
    %376 = vmatprep.subr.mxu0 0.0
    %377 = vmatpush1.msra.mxu0 0.0
    %378 = vmatprep.subr.mxu0 0.0
    %379 = vmatpush1.msra.mxu0 0.0
    %380 = vmatprep.subr.mxu0 0.0
    %381 = vmatpush1.msra.mxu0 0.0
    %382 = vmatprep.subr.mxu0 0.0
    %383 = vmatpush1.msra.mxu0 0.0
    %384 = vmatprep.subr.mxu0 0.0
    %385 = vmatpush1.msra.mxu0 0.0
    %386 = vmatprep.subr.mxu0 0.0
    %387 = vmatpush1.msra.mxu0 0.0
    %388 = vmatprep.subr.mxu0 0.0
    %389 = vmatpush1.msra.mxu0 0.0
    %390 = vmatprep.subr.mxu0 0.0
    %391 = vmatpush1.msra.mxu0 0.0
    %392 = vmatprep.subr.mxu0 0.0
    %393 = vmatpush1.msra.mxu0 0.0
    %394 = vmatprep.mubr.f32.mxu0 0.0
    %395 = vmatmul.mubr.f32.gmra.mrb[0].mxu0 %v312
    %v396 = vpop.f32.mrb[0].mxu0
    %v397 = vadd.f32 %v329, %v396
    %v398 = vpop.f32.mrb[0].mxu0
    %399 = vdwg.mxu0
    %v400 = vmax.f32 %v397, 0.0
    %401 = vadd.xlane.f32.xlu0 %v400
    %v402 = vpop.xlane.xlu0 %401
    %v403 = vmul.f32 %v402, 0.03125
    %v404 = vmul.f32 %v400, %v400
    %405 = vadd.xlane.f32.xlu0 %v404
    %v406 = vpop.xlane.xlu0 %405
    %v407 = vmul.f32 %v406, 0.03125
    %v408 = vmul.f32 %v403, %v403
    %v409 = vsub.f32 %v407, %v408
    %v410 = vmax.f32 %v409, 0.0
    %v411 = vsub.f32 %v400, %v403
    %v412 = vadd.f32 %v410, 1e-05
    %v413 = vrsqrt.pop %v412
    %v414 = vmul.f32 %v411, %v413
    %v415 = vld [vmem:[%s8 + $0x9] ss:$0 sm:$0xff]
    %v416 = vmul.f32 %v414, %v415
    %v417 = vld [vmem:[%s8 + $0xa] ss:$0 sm:$0xff]
    %v418 = vadd.f32 %v416, %v417
    %v419 = vadd.f32 %v418, %v118
    %420 = vst [vmem:[#allocation13] sm:$0xff] %v419
    %v421 = vld [vmem:[#allocation8] sm:$0xff]
    %v422 = vld [vmem:[#allocation8 + $0x8] sm:$0xff]
    %v423 = vld [vmem:[#allocation8 + $0x10] sm:$0xff]
    %v424 = vld [vmem:[#allocation8 + $0x18] sm:$0xff]
    %v425 = vld [vmem:[#allocation8 + $0x20] sm:$0xff]
    %v426 = vld [vmem:[#allocation8 + $0x28] sm:$0xff]
    %v427 = vld [vmem:[#allocation8 + $0x30] sm:$0xff]
    %v428 = vld [vmem:[#allocation8 + $0x38] sm:$0xff]
    %v429 = vld [vmem:[#allocation8 + $0x40] sm:$0xff]
    %v430 = vld [vmem:[#allocation8 + $0x48] sm:$0xff]
    %v431 = vld [vmem:[#allocation8 + $0x50] sm:$0xff]
    %v432 = vld [vmem:[#allocation8 + $0x58] sm:$0xff]
    %v433 = vld [vmem:[#allocation8 + $0x60] sm:$0xff]
    %v434 = vld [vmem:[#allocation8 + $0x68] sm:$0xff]
    %v435 = vld [vmem:[#allocation8 + $0x70] sm:$0xff]
    %v436 = vld [vmem:[#allocation8 + $0x78] sm:$0xff]
    %v437 = vld [vmem:[#allocation10] sm:$0xff]
    %v438 = vld [vmem:[#allocation10 + $0x8] sm:$0xff]
    %v439 = vld [vmem:[#allocation10 + $0x10] sm:$0xff]
    %v440 = vld [vmem:[#allocation10 + $0x18] sm:$0xff]
    %v441 = vld [vmem:[#allocation10 + $0x20] sm:$0xff]
    %v442 = vld [vmem:[#allocation10 + $0x28] sm:$0xff]
    %v443 = vld [vmem:[#allocation10 + $0x30] sm:$0xff]
    %v444 = vld [vmem:[#allocation10 + $0x38] sm:$0xff]
    %v445 = vld [vmem:[#allocation10 + $0x40] sm:$0xff]
    %v446 = vld [vmem:[#allocation10 + $0x48] sm:$0xff]
    %v447 = vld [vmem:[#allocation10 + $0x50] sm:$0xff]
    %v448 = vld [vmem:[#allocation10 + $0x58] sm:$0xff]
    %v449 = vld [vmem:[#allocation10 + $0x60] sm:$0xff]
    %v450 = vld [vmem:[#allocation10 + $0x68] sm:$0xff]
    %v451 = vld [vmem:[#allocation10 + $0x70] sm:$0xff]
    %v452 = vld [vmem:[#allocation10 + $0x78] sm:$0xff]
    %453 = vmatprep.subr.mxu0 0.0
    %454 = vmatpush1.msra.mxu0 %v437
    %455 = vmatprep.subr.mxu0 0.0
    %456 = vmatpush1.msra.mxu0 %v438
    %457 = vmatprep.subr.mxu0 0.0
    %458 = vmatpush1.msra.mxu0 %v439
    %459 = vmatprep.subr.mxu0 0.0
    %460 = vmatpush1.msra.mxu0 %v440
    %461 = vmatprep.subr.mxu0 0.0
    %462 = vmatpush1.msra.mxu0 %v441
    %463 = vmatprep.subr.mxu0 0.0
    %464 = vmatpush1.msra.mxu0 %v442
    %465 = vmatprep.subr.mxu0 0.0
    %466 = vmatpush1.msra.mxu0 %v443
    %467 = vmatprep.subr.mxu0 0.0
    %468 = vmatpush1.msra.mxu0 %v444
    %469 = vmatprep.subr.mxu0 0.0
    %470 = vmatpush1.msra.mxu0 %v445
    %471 = vmatprep.subr.mxu0 0.0
    %472 = vmatpush1.msra.mxu0 %v446
    %473 = vmatprep.subr.mxu0 0.0
    %474 = vmatpush1.msra.mxu0 %v447
    %475 = vmatprep.subr.mxu0 0.0
    %476 = vmatpush1.msra.mxu0 %v448
    %477 = vmatprep.subr.mxu0 0.0
    %478 = vmatpush1.msra.mxu0 %v449
    %479 = vmatprep.subr.mxu0 0.0
    %480 = vmatpush1.msra.mxu0 %v450
    %481 = vmatprep.subr.mxu0 0.0
    %482 = vmatpush1.msra.mxu0 %v451
    %483 = vmatprep.subr.mxu0 0.0
    %484 = vmatpush1.msra.mxu0 %v452
    %485 = vmatprep.subr.mxu0 0.0
    %486 = vmatpush1.msra.mxu0 0.0
    %487 = vmatprep.subr.mxu0 0.0
    %488 = vmatpush1.msra.mxu0 0.0
    %489 = vmatprep.subr.mxu0 0.0
    %490 = vmatpush1.msra.mxu0 0.0
    %491 = vmatprep.subr.mxu0 0.0
    %492 = vmatpush1.msra.mxu0 0.0
    %493 = vmatprep.subr.mxu0 0.0
    %494 = vmatpush1.msra.mxu0 0.0
    %495 = vmatprep.subr.mxu0 0.0
    %496 = vmatpush1.msra.mxu0 0.0
    %497 = vmatprep.subr.mxu0 0.0
    %498 = vmatpush1.msra.mxu0 0.0
    %499 = vmatprep.subr.mxu0 0.0
    %500 = vmatpush1.msra.mxu0 0.0
    %501 = vmatprep.subr.mxu0 0.0
    %502 = vmatpush1.msra.mxu0 0.0
    %503 = vmatprep.subr.mxu0 0.0
    %504 = vmatpush1.msra.mxu0 0.0
    %505 = vmatprep.subr.mxu0 0.0
    %506 = vmatpush1.msra.mxu0 0.0
    %507 = vmatprep.subr.mxu0 0.0
    %508 = vmatpush1.msra.mxu0 0.0
    %509 = vmatprep.subr.mxu0 0.0
    %510 = vmatpush1.msra.mxu0 0.0
    %511 = vmatprep.subr.mxu0 0.0
    %512 = vmatpush1.msra.mxu0 0.0
    %513 = vmatprep.subr.mxu0 0.0
    %514 = vmatpush1.msra.mxu0 0.0
    %515 = vmatprep.subr.mxu0 0.0
    %516 = vmatpush1.msra.mxu0 0.0
    %517 = vmatprep.mubr.f32.mxu0 0.0
    %518 = vmatmul.mubr.f32.gmra.mrb[0].mxu0 %v119
    %v519 = vpop.f32.mrb[0].mxu0
    %v520 = vadd.f32 0.0, %v519
    %v521 = vpop.f32.mrb[0].mxu0
    %522 = vdwg.mxu0
    %523 = vmatprep.subr.mxu0 0.0
    %524 = vmatpush1.msra.mxu0 %v421
    %525 = vmatprep.subr.mxu0 0.0
    %526 = vmatpush1.msra.mxu0 %v422
    %527 = vmatprep.subr.mxu0 0.0
    %528 = vmatpush1.msra.mxu0 %v423
    %529 = vmatprep.subr.mxu0 0.0
    %530 = vmatpush1.msra.mxu0 %v424
    %531 = vmatprep.subr.mxu0 0.0
    %532 = vmatpush1.msra.mxu0 %v425
    %533 = vmatprep.subr.mxu0 0.0
    %534 = vmatpush1.msra.mxu0 %v426
    %535 = vmatprep.subr.mxu0 0.0
    %536 = vmatpush1.msra.mxu0 %v427
    %537 = vmatprep.subr.mxu0 0.0
    %538 = vmatpush1.msra.mxu0 %v428
    %539 = vmatprep.subr.mxu0 0.0
    %540 = vmatpush1.msra.mxu0 %v429
    %541 = vmatprep.subr.mxu0 0.0
    %542 = vmatpush1.msra.mxu0 %v430
    %543 = vmatprep.subr.mxu0 0.0
    %544 = vmatpush1.msra.mxu0 %v431
    %545 = vmatprep.subr.mxu0 0.0
    %546 = vmatpush1.msra.mxu0 %v432
    %547 = vmatprep.subr.mxu0 0.0
    %548 = vmatpush1.msra.mxu0 %v433
    %549 = vmatprep.subr.mxu0 0.0
    %550 = vmatpush1.msra.mxu0 %v434
    %551 = vmatprep.subr.mxu0 0.0
    %552 = vmatpush1.msra.mxu0 %v435
    %553 = vmatprep.subr.mxu0 0.0
    %554 = vmatpush1.msra.mxu0 %v436
    %555 = vmatprep.subr.mxu0 0.0
    %556 = vmatpush1.msra.mxu0 0.0
    %557 = vmatprep.subr.mxu0 0.0
    %558 = vmatpush1.msra.mxu0 0.0
    %559 = vmatprep.subr.mxu0 0.0
    %560 = vmatpush1.msra.mxu0 0.0
    %561 = vmatprep.subr.mxu0 0.0
    %562 = vmatpush1.msra.mxu0 0.0
    %563 = vmatprep.subr.mxu0 0.0
    %564 = vmatpush1.msra.mxu0 0.0
    %565 = vmatprep.subr.mxu0 0.0
    %566 = vmatpush1.msra.mxu0 0.0
    %567 = vmatprep.subr.mxu0 0.0
    %568 = vmatpush1.msra.mxu0 0.0
    %569 = vmatprep.subr.mxu0 0.0
    %570 = vmatpush1.msra.mxu0 0.0
    %571 = vmatprep.subr.mxu0 0.0
    %572 = vmatpush1.msra.mxu0 0.0
    %573 = vmatprep.subr.mxu0 0.0
    %574 = vmatpush1.msra.mxu0 0.0
    %575 = vmatprep.subr.mxu0 0.0
    %576 = vmatpush1.msra.mxu0 0.0
    %577 = vmatprep.subr.mxu0 0.0
    %578 = vmatpush1.msra.mxu0 0.0
    %579 = vmatprep.subr.mxu0 0.0
    %580 = vmatpush1.msra.mxu0 0.0
    %581 = vmatprep.subr.mxu0 0.0
    %582 = vmatpush1.msra.mxu0 0.0
    %583 = vmatprep.subr.mxu0 0.0
    %584 = vmatpush1.msra.mxu0 0.0
    %585 = vmatprep.subr.mxu0 0.0
    %586 = vmatpush1.msra.mxu0 0.0
    %587 = vmatprep.mubr.f32.mxu0 0.0
    %588 = vmatmul.mubr.f32.gmra.mrb[0].mxu0 %v419
    %v589 = vpop.f32.mrb[0].mxu0
    %v590 = vadd.f32 %v520, %v589
    %v591 = vpop.f32.mrb[0].mxu0
    %592 = vdwg.mxu0
    %v593 = vld [vmem:[%s8 + $0x10] ss:$0 sm:$0xff]
    %v594 = vadd.f32 %v590, %v593
    %v595 = vmax.f32 %v594, 0.0
    %596 = vadd.xlane.f32.xlu0 %v595
    %v597 = vpop.xlane.xlu0 %596
    %v598 = vmul.f32 %v597, 0.03125
    %v599 = vmul.f32 %v595, %v595
    %600 = vadd.xlane.f32.xlu0 %v599
    %v601 = vpop.xlane.xlu0 %600
    %v602 = vmul.f32 %v601, 0.03125
    %v603 = vmul.f32 %v598, %v598
    %v604 = vsub.f32 %v602, %v603
    %v605 = vmax.f32 %v604, 0.0
    %v606 = vsub.f32 %v595, %v598
    %v607 = vadd.f32 %v605, 1e-05
    %v608 = vrsqrt.pop %v607
    %v609 = vmul.f32 %v606, %v608
    %v610 = vld [vmem:[%s8 + $0x11] ss:$0 sm:$0xff]
    %v611 = vmul.f32 %v609, %v610
    %v612 = vld [vmem:[%s8 + $0x12] ss:$0 sm:$0xff]
    %v613 = vadd.f32 %v611, %v612
    %v614 = vld [vmem:[#allocation11] sm:$0xff]
    %v615 = vld [vmem:[#allocation11 + $0x8] sm:$0xff]
    %v616 = vld [vmem:[#allocation11 + $0x10] sm:$0xff]
    %v617 = vld [vmem:[#allocation11 + $0x18] sm:$0xff]
    %v618 = vld [vmem:[#allocation11 + $0x20] sm:$0xff]
    %v619 = vld [vmem:[#allocation11 + $0x28] sm:$0xff]
    %v620 = vld [vmem:[#allocation11 + $0x30] sm:$0xff]
    %v621 = vld [vmem:[#allocation11 + $0x38] sm:$0xff]
    %v622 = vld [vmem:[#allocation11 + $0x40] sm:$0xff]
    %v623 = vld [vmem:[#allocation11 + $0x48] sm:$0xff]
    %v624 = vld [vmem:[#allocation11 + $0x50] sm:$0xff]
    %v625 = vld [vmem:[#allocation11 + $0x58] sm:$0xff]
    %v626 = vld [vmem:[#allocation11 + $0x60] sm:$0xff]
    %v627 = vld [vmem:[#allocation11 + $0x68] sm:$0xff]
    %v628 = vld [vmem:[#allocation11 + $0x70] sm:$0xff]
    %v629 = vld [vmem:[#allocation11 + $0x78] sm:$0xff]
    %v630 = vld [vmem:[%s8 + $0x18] ss:$0 sm:$0xff]
    %631 = vmatprep.subr.mxu0 0.0
    %632 = vmatpush1.msra.mxu0 %v614
    %633 = vmatprep.subr.mxu0 0.0
    %634 = vmatpush1.msra.mxu0 %v615
    %635 = vmatprep.subr.mxu0 0.0
    %636 = vmatpush1.msra.mxu0 %v616
    %637 = vmatprep.subr.mxu0 0.0
    %638 = vmatpush1.msra.mxu0 %v617
    %639 = vmatprep.subr.mxu0 0.0
    %640 = vmatpush1.msra.mxu0 %v618
    %641 = vmatprep.subr.mxu0 0.0
    %642 = vmatpush1.msra.mxu0 %v619
    %643 = vmatprep.subr.mxu0 0.0
    %644 = vmatpush1.msra.mxu0 %v620
    %645 = vmatprep.subr.mxu0 0.0
    %646 = vmatpush1.msra.mxu0 %v621
    %647 = vmatprep.subr.mxu0 0.0
    %648 = vmatpush1.msra.mxu0 %v622
    %649 = vmatprep.subr.mxu0 0.0
    %650 = vmatpush1.msra.mxu0 %v623
    %651 = vmatprep.subr.mxu0 0.0
    %652 = vmatpush1.msra.mxu0 %v624
    %653 = vmatprep.subr.mxu0 0.0
    %654 = vmatpush1.msra.mxu0 %v625
    %655 = vmatprep.subr.mxu0 0.0
    %656 = vmatpush1.msra.mxu0 %v626
    %657 = vmatprep.subr.mxu0 0.0
    %658 = vmatpush1.msra.mxu0 %v627
    %659 = vmatprep.subr.mxu0 0.0
    %660 = vmatpush1.msra.mxu0 %v628
    %661 = vmatprep.subr.mxu0 0.0
    %662 = vmatpush1.msra.mxu0 %v629
    %663 = vmatprep.subr.mxu0 0.0
    %664 = vmatpush1.msra.mxu0 0.0
    %665 = vmatprep.subr.mxu0 0.0
    %666 = vmatpush1.msra.mxu0 0.0
    %667 = vmatprep.subr.mxu0 0.0
    %668 = vmatpush1.msra.mxu0 0.0
    %669 = vmatprep.subr.mxu0 0.0
    %670 = vmatpush1.msra.mxu0 0.0
    %671 = vmatprep.subr.mxu0 0.0
    %672 = vmatpush1.msra.mxu0 0.0
    %673 = vmatprep.subr.mxu0 0.0
    %674 = vmatpush1.msra.mxu0 0.0
    %675 = vmatprep.subr.mxu0 0.0
    %676 = vmatpush1.msra.mxu0 0.0
    %677 = vmatprep.subr.mxu0 0.0
    %678 = vmatpush1.msra.mxu0 0.0
    %679 = vmatprep.subr.mxu0 0.0
    %680 = vmatpush1.msra.mxu0 0.0
    %681 = vmatprep.subr.mxu0 0.0
    %682 = vmatpush1.msra.mxu0 0.0
    %683 = vmatprep.subr.mxu0 0.0
    %684 = vmatpush1.msra.mxu0 0.0
    %685 = vmatprep.subr.mxu0 0.0
    %686 = vmatpush1.msra.mxu0 0.0
    %687 = vmatprep.subr.mxu0 0.0
    %688 = vmatpush1.msra.mxu0 0.0
    %689 = vmatprep.subr.mxu0 0.0
    %690 = vmatpush1.msra.mxu0 0.0
    %691 = vmatprep.subr.mxu0 0.0
    %692 = vmatpush1.msra.mxu0 0.0
    %693 = vmatprep.subr.mxu0 0.0
    %694 = vmatpush1.msra.mxu0 0.0
    %695 = vmatprep.mubr.f32.mxu0 0.0
    %696 = vmatmul.mubr.f32.gmra.mrb[0].mxu0 %v613
    %v697 = vpop.f32.mrb[0].mxu0
    %v698 = vadd.f32 %v630, %v697
    %v699 = vpop.f32.mrb[0].mxu0
    %700 = vdwg.mxu0
    %701 = vst [vmem:[#allocation14] sm:$0xff] %v698
    // Predicated region
    $region62: #{forward.1} parent=1 // pred_check
      _
    $region63: #{forward.1} parent=1 // pred_check_branch
      %703 = sbr.rel (0) target = $region65
    $region64: #{forward.1} parent=1 // pred_region
      %s705 = ssub.s32 128, 128
      %706 = vsyncadd [#allocation4], %s705
      %s708 = sshll.u32 [#allocation13], 4
      %s709 = int_to_ptr.vmem [resolvable:$true] %s708
      %711 = dma.vmem_to_hbm [thread:$0]  %s709, 128, %s9, [#allocation4]
    $region65: #{forward.1} parent=1 // pred_fallthru
      _
    // Predicated region
    $region66: #{forward.1} parent=1 // pred_check
      _
    $region67: #{forward.1} parent=1 // pred_check_branch
      %713 = sbr.rel (0) target = $region69
    $region68: #{forward.1} parent=1 // pred_region
      %s715 = ssub.s32 128, 128
      %716 = vsyncadd [#allocation15], %s715
      %s718 = sshll.u32 [#allocation14], 4
      %s719 = int_to_ptr.vmem [resolvable:$true] %s718
      %721 = dma.vmem_to_hbm [thread:$0]  %s719, 128, %s10, [#allocation15]
    $region69: #{forward.1} parent=1 // pred_fallthru
      _
    // Predicated region
    $region70: #{forward.1} parent=1 // pred_check
      _
    $region71: #{forward.1} parent=1 // pred_check_branch
      %723 = sbr.rel (0) target = $region73
    $region72: #{forward.1} parent=1 // pred_region
      %724 = dma.done [#allocation4], 128
    $region73: #{forward.1} parent=1 // pred_fallthru
      _
    // Predicated region
    $region74: #{forward.1} parent=1 // pred_check
      _
    $region75: #{forward.1} parent=1 // pred_check_branch
      %726 = sbr.rel (0) target = $region77
    $region76: #{forward.1} parent=1 // pred_region
      %727 = dma.done [#allocation15], 128
    $region77: #{forward.1} parent=1 // pred_fallthru
      _
    %728 = vsyncpa [#allocation3], 1
    %729 = vsyncpa [#allocation6], 1
    %730 = vsyncpa [#allocation9], 1
    %731 = vsyncpa [#allocation12], 1
    %732 = vsyncpa [#allocation4], 1
    %733 = vsyncpa [#allocation15], 1

</llo_original>
